<compile_context>
chip_gen: v5e
topology: v5e:2x2
jax: 0.10.0
libtpu: 0.0.40
codegen_flags: <defaults>
</compile_context>

<pallas_src>
import functools

import jax
import jax.numpy as jnp
import numpy as np
from jax.experimental import pallas as pl
from jax.experimental.pallas import tpu as pltpu


def _round_up(x, m):
    return ((x + m - 1) // m) * m


def _amg_encoder_kernel(tm_ref, x_ref, fg_ref, out_ref, *, D, H, W, FC_PAD):
    g = pl.program_id(0)
    B = x_ref.shape[1]          # batch tile (lane axis)

    # ---- transform(): p = R @ x + t (rows 0:3 of the 4x4 matrix) ----
    px = x_ref[0:1, :]          # (1, B)
    py = x_ref[1:2, :]
    pz = x_ref[2:3, :]

    def tm(i, j):               # scalar read from SMEM
        return tm_ref[g, i * 4 + j]

    p0 = tm(0, 0) * px + tm(0, 1) * py + tm(0, 2) * pz + tm(0, 3)
    p1 = tm(1, 0) * px + tm(1, 1) * py + tm(1, 2) * pz + tm(1, 3)
    p2 = tm(2, 0) * px + tm(2, 1) * py + tm(2, 2) * pz + tm(2, 3)

    # ---- grid_sample: trilinear, align_corners=True, zeros padding ----
    # grid coord 0 -> W axis, 1 -> H axis, 2 -> D axis (PyTorch convention).
    ix = (p0 + 1.0) * 0.5 * (W - 1)
    iy = (p1 + 1.0) * 0.5 * (H - 1)
    iz = (p2 + 1.0) * 0.5 * (D - 1)

    def axis_weights(coord, n):
        """(n, B) per-axis interpolation weights; 2 taps per point.

        Taps whose index falls outside [0, n) never match the iota, so the
        'zeros' padding of grid_sample is handled implicitly.
        """
        c0f = jnp.floor(coord)
        frac = coord - c0f                      # in [0, 1)
        c0 = c0f.astype(jnp.int32)              # (1, B)
        iota = jax.lax.broadcasted_iota(jnp.int32, (n, B), 0)
        return jnp.where(iota == c0, 1.0 - frac,
                         jnp.where(iota == c0 + 1, frac, 0.0))

    wx = axis_weights(ix, W)    # (W, B)
    wy = axis_weights(iy, H)    # (H, B)
    wz = axis_weights(iz, D)    # (D, B)

    # Stage 1 (MXU): contract H and W in one matmul.
    #   wyx[h*W + w, b] = wy[h,b] * wx[w,b]
    #   feats2[d*FC_PAD + f, b] = sum_{h,w} fg[f,d,h,w] * wyx[h*W+w, b]
    wyx = (wy[:, None, :] * wx[None, :, :]).reshape(H * W, B)
    fg2 = fg_ref[0]                                         # (D*FC_PAD, H*W)
    feats2 = jnp.dot(fg2, wyx,
                     preferred_element_type=jnp.float32,
                     precision=jax.lax.Precision.HIGHEST)   # (D*FC_PAD, B)

    # Stage 2 (VPU): contract D with D static, 8-aligned sublane slices.
    #   out[f,b] = sum_d feats2[d*FC_PAD + f, b] * wz[d,b]
    acc = feats2[0:FC_PAD, :] * wz[0:1, :]
    for d in range(1, D):
        acc = acc + feats2[d * FC_PAD:(d + 1) * FC_PAD, :] * wz[d:d + 1, :]

    out_ref[0] = acc


def amg_encoder_forward(x, transformation_matrices, feature_grids, *, batch_tile=512):
    """x: [batch, 3]; returns [batch, n_grids * n_features] (matches PyTorch forward)."""
    G, Fc = feature_grids.shape[0], feature_grids.shape[1]
    D, H, W = feature_grids.shape[2:]
    B = x.shape[0]

    assert batch_tile % 128 == 0, "batch_tile must be a multiple of 128 lanes"
    BT = min(batch_tile, _round_up(B, 128))     # lane-dense batch tile
    B_pad = _round_up(B, BT)
    FC_PAD = _round_up(Fc, 8)                   # sublane-dense output / MXU rows >= 8

    tm_flat = transformation_matrices.reshape(G, 16).astype(jnp.float32)

    # Pre-layout the (parameter-sized, one-time) feature grid for the kernel:
    #   fg2[g, d*FC_PAD + f, h*W + w] = feature_grids[g, f, d, h, w]
    fg_p = feature_grids.astype(jnp.float32)
    if FC_PAD != Fc:
        fg_p = jnp.pad(fg_p, ((0, 0), (0, FC_PAD - Fc), (0, 0), (0, 0), (0, 0)))
    fg2 = jnp.transpose(fg_p, (0, 2, 1, 3, 4)).reshape(G, D * FC_PAD, H * W)

    x_t = x.T.astype(jnp.float32)               # (3, B)
    if B_pad != B:
        x_t = jnp.pad(x_t, ((0, 0), (0, B_pad - B)))

    kernel = functools.partial(_amg_encoder_kernel, D=D, H=H, W=W, FC_PAD=FC_PAD)
    out = pl.pallas_call(
        kernel,
        out_shape=jax.ShapeDtypeStruct((G, FC_PAD, B_pad), jnp.float32),
        grid_spec=pltpu.PrefetchScalarGridSpec(
            num_scalar_prefetch=0,
            grid=(G, B_pad // BT),                                        # batch inner ->
            in_specs=[                                                    # fg2 stays resident
                pl.BlockSpec(memory_space=pltpu.MemorySpace.SMEM),        # tm_flat (whole array)
                pl.BlockSpec((3, BT), lambda g, b: (0, b)),               # x_t batch tile
                pl.BlockSpec((1, D * FC_PAD, H * W), lambda g, b: (g, 0, 0)),  # fg2 (per-grid)
            ],
            out_specs=pl.BlockSpec((1, FC_PAD, BT), lambda g, b: (g, 0, b)),
        ),
        compiler_params=pltpu.CompilerParams(
            dimension_semantics=("parallel", "parallel"),
            vmem_limit_bytes=32 * 1024 * 1024,
        ),
    )(tm_flat, x_t, fg2)

    out = out[:, :Fc, :B]
    # torch: grid_sample(...).flatten(0,3).permute(1,0) -> [B, G*Fc] (grid-major features)
    return jnp.transpose(out, (2, 0, 1)).reshape(B, G * Fc)


def reference_forward(x, tm, feature_grids):
    """Pure-JAX reference (gather-based grid_sample) for correctness checking."""
    G, Fc, D, H, W = feature_grids.shape
    B = x.shape[0]
    flat = feature_grids.reshape(G, Fc, D * H * W)

    px, py, pz = x[:, 0][None, :], x[:, 1][None, :], x[:, 2][None, :]  # (1, B)
    r = tm  # (G, 4, 4)
    p0 = r[:, 0, 0:1] * px + r[:, 0, 1:2] * py + r[:, 0, 2:3] * pz + r[:, 0, 3:4]
    p1 = r[:, 1, 0:1] * px + r[:, 1, 1:2] * py + r[:, 1, 2:3] * pz + r[:, 1, 3:4]
    p2 = r[:, 2, 0:1] * px + r[:, 2, 1:2] * py + r[:, 2, 2:3] * pz + r[:, 2, 3:4]

    ix = (p0 + 1.0) * 0.5 * (W - 1)
    iy = (p1 + 1.0) * 0.5 * (H - 1)
    iz = (p2 + 1.0) * 0.5 * (D - 1)
    x0f, y0f, z0f = jnp.floor(ix), jnp.floor(iy), jnp.floor(iz)
    wx, wy, wz = ix - x0f, iy - y0f, iz - z0f
    x0 = x0f.astype(jnp.int32)
    y0 = y0f.astype(jnp.int32)
    z0 = z0f.astype(jnp.int32)

    acc = jnp.zeros((G, Fc, B), jnp.float32)
    for dz in (0, 1):
        for dy in (0, 1):
            for dx in (0, 1):
                xi, yi, zi = x0 + dx, y0 + dy, z0 + dz
                w = ((wx if dx else (1.0 - wx)) *
                     (wy if dy else (1.0 - wy)) *
                     (wz if dz else (1.0 - wz)))  # (G, B)
                valid = ((xi >= 0) & (xi < W) &
                         (yi >= 0) & (yi < H) &
                         (zi >= 0) & (zi < D))
                xic = jnp.clip(xi, 0, W - 1)
                yic = jnp.clip(yi, 0, H - 1)
                zic = jnp.clip(zi, 0, D - 1)
                lin = zic * (H * W) + yic * W + xic  # (G, B)
                idx = jnp.broadcast_to(lin[:, None, :], (G, Fc, B))
                vals = jnp.take_along_axis(flat, idx, axis=2)  # (G, Fc, B)
                acc = acc + jnp.where(valid[:, None, :], w[:, None, :] * vals, 0.0)
    return jnp.transpose(acc, (2, 0, 1)).reshape(B, G * Fc)


if __name__ == "__main__":
    key = jax.random.PRNGKey(0)
    n_grids, n_features = 4, 4
    feat_grid_shape = [8, 8, 8]
    n_dims = 3
    batch = 128

    k1, k2, k3 = jax.random.split(key, 3)

    # feature_grids ~ U(-1e-4, 1e-4)  (matches torch .uniform_(-0.0001, 0.0001))
    feature_grids = jax.random.uniform(
        k1, (n_grids, n_features, *feat_grid_shape),
        minval=-1e-4, maxval=1e-4, dtype=jnp.float32)

    # transformation matrices: randomize_grids()  (identity + 0.05*randn on top rows)
    eye = jnp.eye(n_dims + 1, dtype=jnp.float32)
    tm = jnp.tile(eye[None], (n_grids, 1, 1))
    noise = jax.random.normal(k2, (n_grids, n_dims, n_dims + 1), dtype=jnp.float32) * 0.05
    tm = tm.at[:, 0:n_dims, :].add(noise)
    tm = tm.at[:, n_dims, 0:n_dims].set(0.0)
    tm = tm.at[:, -1, -1].set(1.0)

    x = jax.random.uniform(k3, (batch, n_dims), minval=-1.0, maxval=1.0, dtype=jnp.float32)

    out = amg_encoder_forward(x, tm, feature_grids)
    out = jax.block_until_ready(out)

    ref = jax.block_until_ready(reference_forward(x, tm, feature_grids))

    assert out.shape == (batch, n_grids * n_features)
    np.testing.assert_allclose(np.asarray(out), np.asarray(ref), rtol=1e-4, atol=1e-8)
    print("KERNEL_OK")
</pallas_src>

<mosaic_0001>
module attributes {stable_mosaic.version = 11 : i64} {
  func.func @_amg_encoder_kernel(%arg0: i32, %arg1: i32, %arg2: memref<4x16xf32, #tpu.memory_space<smem>>, %arg3: memref<3x128xf32, #tpu.memory_space<vmem>>, %arg4: memref<1x64x64xf32, #tpu.memory_space<vmem>>, %arg5: memref<1x8x128xf32, #tpu.memory_space<vmem>>) attributes {dimension_semantics = [#tpu.dimension_semantics<parallel>, #tpu.dimension_semantics<parallel>], iteration_bounds = array<i64: 4, 1>, scalar_prefetch = 0 : i64, scratch_operands = 0 : i64, tpu.core_type = #tpu.core_type<tc>, window_params = [{transform_indices = @transform_0, window_bounds = array<i64: 4, 16>}, {transform_indices = @transform_1, window_bounds = array<i64: 3, 128>}, {transform_indices = @transform_2, window_bounds = array<i64: 1, 64, 64>}, {transform_indices = @transform_3, window_bounds = array<i64: 1, 8, 128>}]} {
    %c0 = arith.constant 0 : index
    %c0_0 = arith.constant 0 : index
    %0 = vector.load %arg3[%c0, %c0_0] : memref<3x128xf32, #tpu.memory_space<vmem>>, vector<1x128xf32>
    %c1 = arith.constant 1 : index
    %c0_1 = arith.constant 0 : index
    %1 = vector.load %arg3[%c1, %c0_1] : memref<3x128xf32, #tpu.memory_space<vmem>>, vector<1x128xf32>
    %c2 = arith.constant 2 : index
    %c0_2 = arith.constant 0 : index
    %2 = vector.load %arg3[%c2, %c0_2] : memref<3x128xf32, #tpu.memory_space<vmem>>, vector<1x128xf32>
    %3 = arith.index_cast %arg0 : i32 to index
    %c0_3 = arith.constant 0 : index
    %4 = memref.load %arg2[%3, %c0_3] : memref<4x16xf32, #tpu.memory_space<smem>>
    %5 = vector.broadcast %4 : f32 to vector<1x128xf32>
    %6 = arith.mulf %5, %0 : vector<1x128xf32>
    %7 = arith.index_cast %arg0 : i32 to index
    %c1_4 = arith.constant 1 : index
    %8 = memref.load %arg2[%7, %c1_4] : memref<4x16xf32, #tpu.memory_space<smem>>
    %9 = vector.broadcast %8 : f32 to vector<1x128xf32>
    %10 = arith.mulf %9, %1 : vector<1x128xf32>
    %11 = arith.addf %6, %10 : vector<1x128xf32>
    %12 = arith.index_cast %arg0 : i32 to index
    %c2_5 = arith.constant 2 : index
    %13 = memref.load %arg2[%12, %c2_5] : memref<4x16xf32, #tpu.memory_space<smem>>
    %14 = vector.broadcast %13 : f32 to vector<1x128xf32>
    %15 = arith.mulf %14, %2 : vector<1x128xf32>
    %16 = arith.addf %11, %15 : vector<1x128xf32>
    %17 = arith.index_cast %arg0 : i32 to index
    %c3 = arith.constant 3 : index
    %18 = memref.load %arg2[%17, %c3] : memref<4x16xf32, #tpu.memory_space<smem>>
    %19 = vector.broadcast %18 : f32 to vector<1x128xf32>
    %20 = arith.addf %16, %19 : vector<1x128xf32>
    %21 = arith.index_cast %arg0 : i32 to index
    %c4 = arith.constant 4 : index
    %22 = memref.load %arg2[%21, %c4] : memref<4x16xf32, #tpu.memory_space<smem>>
    %23 = vector.broadcast %22 : f32 to vector<1x128xf32>
    %24 = arith.mulf %23, %0 : vector<1x128xf32>
    %25 = arith.index_cast %arg0 : i32 to index
    %c5 = arith.constant 5 : index
    %26 = memref.load %arg2[%25, %c5] : memref<4x16xf32, #tpu.memory_space<smem>>
    %27 = vector.broadcast %26 : f32 to vector<1x128xf32>
    %28 = arith.mulf %27, %1 : vector<1x128xf32>
    %29 = arith.addf %24, %28 : vector<1x128xf32>
    %30 = arith.index_cast %arg0 : i32 to index
    %c6 = arith.constant 6 : index
    %31 = memref.load %arg2[%30, %c6] : memref<4x16xf32, #tpu.memory_space<smem>>
    %32 = vector.broadcast %31 : f32 to vector<1x128xf32>
    %33 = arith.mulf %32, %2 : vector<1x128xf32>
    %34 = arith.addf %29, %33 : vector<1x128xf32>
    %35 = arith.index_cast %arg0 : i32 to index
    %c7 = arith.constant 7 : index
    %36 = memref.load %arg2[%35, %c7] : memref<4x16xf32, #tpu.memory_space<smem>>
    %37 = vector.broadcast %36 : f32 to vector<1x128xf32>
    %38 = arith.addf %34, %37 : vector<1x128xf32>
    %39 = arith.index_cast %arg0 : i32 to index
    %c8 = arith.constant 8 : index
    %40 = memref.load %arg2[%39, %c8] : memref<4x16xf32, #tpu.memory_space<smem>>
    %41 = vector.broadcast %40 : f32 to vector<1x128xf32>
    %42 = arith.mulf %41, %0 : vector<1x128xf32>
    %43 = arith.index_cast %arg0 : i32 to index
    %c9 = arith.constant 9 : index
    %44 = memref.load %arg2[%43, %c9] : memref<4x16xf32, #tpu.memory_space<smem>>
    %45 = vector.broadcast %44 : f32 to vector<1x128xf32>
    %46 = arith.mulf %45, %1 : vector<1x128xf32>
    %47 = arith.addf %42, %46 : vector<1x128xf32>
    %48 = arith.index_cast %arg0 : i32 to index
    %c10 = arith.constant 10 : index
    %49 = memref.load %arg2[%48, %c10] : memref<4x16xf32, #tpu.memory_space<smem>>
    %50 = vector.broadcast %49 : f32 to vector<1x128xf32>
    %51 = arith.mulf %50, %2 : vector<1x128xf32>
    %52 = arith.addf %47, %51 : vector<1x128xf32>
    %53 = arith.index_cast %arg0 : i32 to index
    %c11 = arith.constant 11 : index
    %54 = memref.load %arg2[%53, %c11] : memref<4x16xf32, #tpu.memory_space<smem>>
    %55 = vector.broadcast %54 : f32 to vector<1x128xf32>
    %56 = arith.addf %52, %55 : vector<1x128xf32>
    %cst = arith.constant 1.000000e+00 : f32
    %57 = vector.broadcast %cst : f32 to vector<1x128xf32>
    %58 = arith.addf %20, %57 : vector<1x128xf32>
    %cst_6 = arith.constant 5.000000e-01 : f32
    %59 = vector.broadcast %cst_6 : f32 to vector<1x128xf32>
    %60 = arith.mulf %58, %59 : vector<1x128xf32>
    %cst_7 = arith.constant 7.000000e+00 : f32
    %61 = vector.broadcast %cst_7 : f32 to vector<1x128xf32>
    %62 = arith.mulf %60, %61 : vector<1x128xf32>
    %cst_8 = arith.constant 1.000000e+00 : f32
    %63 = vector.broadcast %cst_8 : f32 to vector<1x128xf32>
    %64 = arith.addf %38, %63 : vector<1x128xf32>
    %cst_9 = arith.constant 5.000000e-01 : f32
    %65 = vector.broadcast %cst_9 : f32 to vector<1x128xf32>
    %66 = arith.mulf %64, %65 : vector<1x128xf32>
    %cst_10 = arith.constant 7.000000e+00 : f32
    %67 = vector.broadcast %cst_10 : f32 to vector<1x128xf32>
    %68 = arith.mulf %66, %67 : vector<1x128xf32>
    %cst_11 = arith.constant 1.000000e+00 : f32
    %69 = vector.broadcast %cst_11 : f32 to vector<1x128xf32>
    %70 = arith.addf %56, %69 : vector<1x128xf32>
    %cst_12 = arith.constant 5.000000e-01 : f32
    %71 = vector.broadcast %cst_12 : f32 to vector<1x128xf32>
    %72 = arith.mulf %70, %71 : vector<1x128xf32>
    %cst_13 = arith.constant 7.000000e+00 : f32
    %73 = vector.broadcast %cst_13 : f32 to vector<1x128xf32>
    %74 = arith.mulf %72, %73 : vector<1x128xf32>
    %75 = math.floor %62 : vector<1x128xf32>
    %76 = arith.subf %62, %75 : vector<1x128xf32>
    %77 = arith.fptosi %75 : vector<1x128xf32> to vector<1x128xi32>
    %78 = tpu.iota {dimensions = array<i32: 0>} : vector<8x128xi32>
    %79 = vector.broadcast %77 : vector<1x128xi32> to vector<8x128xi32>
    %80 = arith.cmpi eq, %78, %79 : vector<8x128xi32>
    %cst_14 = arith.constant 1.000000e+00 : f32
    %81 = vector.broadcast %cst_14 : f32 to vector<1x128xf32>
    %82 = arith.subf %81, %76 : vector<1x128xf32>
    %c1_i32 = arith.constant 1 : i32
    %83 = vector.broadcast %c1_i32 : i32 to vector<1x128xi32>
    %84 = arith.addi %77, %83 : vector<1x128xi32>
    %85 = vector.broadcast %84 : vector<1x128xi32> to vector<8x128xi32>
    %86 = arith.cmpi eq, %78, %85 : vector<8x128xi32>
    %cst_15 = arith.constant 0.000000e+00 : f32
    %87 = vector.shape_cast %76 : vector<1x128xf32> to vector<1x128xf32>
    %88 = vector.broadcast %87 : vector<1x128xf32> to vector<8x128xf32>
    %89 = vector.broadcast %cst_15 : f32 to vector<8x128xf32>
    %90 = arith.select %86, %88, %89 : vector<8x128xi1>, vector<8x128xf32>
    %91 = vector.shape_cast %82 : vector<1x128xf32> to vector<1x128xf32>
    %92 = vector.broadcast %91 : vector<1x128xf32> to vector<8x128xf32>
    %93 = arith.select %80, %92, %90 : vector<8x128xi1>, vector<8x128xf32>
    %94 = math.floor %68 : vector<1x128xf32>
    %95 = arith.subf %68, %94 : vector<1x128xf32>
    %96 = arith.fptosi %94 : vector<1x128xf32> to vector<1x128xi32>
    %97 = tpu.iota {dimensions = array<i32: 0>} : vector<8x128xi32>
    %98 = vector.broadcast %96 : vector<1x128xi32> to vector<8x128xi32>
    %99 = arith.cmpi eq, %97, %98 : vector<8x128xi32>
    %cst_16 = arith.constant 1.000000e+00 : f32
    %100 = vector.broadcast %cst_16 : f32 to vector<1x128xf32>
    %101 = arith.subf %100, %95 : vector<1x128xf32>
    %c1_i32_17 = arith.constant 1 : i32
    %102 = vector.broadcast %c1_i32_17 : i32 to vector<1x128xi32>
    %103 = arith.addi %96, %102 : vector<1x128xi32>
    %104 = vector.broadcast %103 : vector<1x128xi32> to vector<8x128xi32>
    %105 = arith.cmpi eq, %97, %104 : vector<8x128xi32>
    %cst_18 = arith.constant 0.000000e+00 : f32
    %106 = vector.shape_cast %95 : vector<1x128xf32> to vector<1x128xf32>
    %107 = vector.broadcast %106 : vector<1x128xf32> to vector<8x128xf32>
    %108 = vector.broadcast %cst_18 : f32 to vector<8x128xf32>
    %109 = arith.select %105, %107, %108 : vector<8x128xi1>, vector<8x128xf32>
    %110 = vector.shape_cast %101 : vector<1x128xf32> to vector<1x128xf32>
    %111 = vector.broadcast %110 : vector<1x128xf32> to vector<8x128xf32>
    %112 = arith.select %99, %111, %109 : vector<8x128xi1>, vector<8x128xf32>
    %113 = math.floor %74 : vector<1x128xf32>
    %114 = arith.subf %74, %113 : vector<1x128xf32>
    %115 = arith.fptosi %113 : vector<1x128xf32> to vector<1x128xi32>
    %116 = tpu.iota {dimensions = array<i32: 0>} : vector<8x128xi32>
    %117 = vector.broadcast %115 : vector<1x128xi32> to vector<8x128xi32>
    %118 = arith.cmpi eq, %116, %117 : vector<8x128xi32>
    %cst_19 = arith.constant 1.000000e+00 : f32
    %119 = vector.broadcast %cst_19 : f32 to vector<1x128xf32>
    %120 = arith.subf %119, %114 : vector<1x128xf32>
    %c1_i32_20 = arith.constant 1 : i32
    %121 = vector.broadcast %c1_i32_20 : i32 to vector<1x128xi32>
    %122 = arith.addi %115, %121 : vector<1x128xi32>
    %123 = vector.broadcast %122 : vector<1x128xi32> to vector<8x128xi32>
    %124 = arith.cmpi eq, %116, %123 : vector<8x128xi32>
    %cst_21 = arith.constant 0.000000e+00 : f32
    %125 = vector.shape_cast %114 : vector<1x128xf32> to vector<1x128xf32>
    %126 = vector.broadcast %125 : vector<1x128xf32> to vector<8x128xf32>
    %127 = vector.broadcast %cst_21 : f32 to vector<8x128xf32>
    %128 = arith.select %124, %126, %127 : vector<8x128xi1>, vector<8x128xf32>
    %129 = vector.shape_cast %120 : vector<1x128xf32> to vector<1x128xf32>
    %130 = vector.broadcast %129 : vector<1x128xf32> to vector<8x128xf32>
    %131 = arith.select %118, %130, %128 : vector<8x128xi1>, vector<8x128xf32>
    %132 = vector.shape_cast %112 : vector<8x128xf32> to vector<8x1x128xf32>
    %133 = vector.shape_cast %93 : vector<8x128xf32> to vector<1x8x128xf32>
    %134 = vector.broadcast %132 : vector<8x1x128xf32> to vector<8x8x128xf32>
    %135 = vector.broadcast %133 : vector<1x8x128xf32> to vector<8x8x128xf32>
    %136 = arith.mulf %134, %135 : vector<8x8x128xf32>
    %137 = vector.shape_cast %136 : vector<8x8x128xf32> to vector<64x128xf32>
    %c0_22 = arith.constant 0 : index
    %c0_23 = arith.constant 0 : index
    %c0_24 = arith.constant 0 : index
    %138 = vector.load %arg4[%c0_22, %c0_23, %c0_24] : memref<1x64x64xf32, #tpu.memory_space<vmem>>, vector<1x64x64xf32>
    %139 = vector.shape_cast %138 : vector<1x64x64xf32> to vector<64x64xf32>
    %cst_25 = arith.constant dense<0.000000e+00> : vector<64x128xf32>
    %140 = tpu.matmul %139, %137, %cst_25 {dimension_numbers = #tpu.dot_dimension_numbers<[1], [0], [0], [1], [0, 0, 1, 1], [], []>, precision = #tpu.contract_precision<fp32>} : vector<64x64xf32>, vector<64x128xf32>, vector<64x128xf32> -> vector<64x128xf32>
    %141 = vector.extract_strided_slice %140 {offsets = [0, 0], sizes = [8, 128], strides = [1, 1]} : vector<64x128xf32> to vector<8x128xf32>
    %142 = vector.extract_strided_slice %131 {offsets = [0, 0], sizes = [1, 128], strides = [1, 1]} : vector<8x128xf32> to vector<1x128xf32>
    %143 = vector.broadcast %142 : vector<1x128xf32> to vector<8x128xf32>
    %144 = arith.mulf %141, %143 : vector<8x128xf32>
    %145 = vector.extract_strided_slice %140 {offsets = [8, 0], sizes = [8, 128], strides = [1, 1]} : vector<64x128xf32> to vector<8x128xf32>
    %146 = vector.extract_strided_slice %131 {offsets = [1, 0], sizes = [1, 128], strides = [1, 1]} : vector<8x128xf32> to vector<1x128xf32>
    %147 = vector.broadcast %146 : vector<1x128xf32> to vector<8x128xf32>
    %148 = arith.mulf %145, %147 : vector<8x128xf32>
    %149 = arith.addf %144, %148 : vector<8x128xf32>
    %150 = vector.extract_strided_slice %140 {offsets = [16, 0], sizes = [8, 128], strides = [1, 1]} : vector<64x128xf32> to vector<8x128xf32>
    %151 = vector.extract_strided_slice %131 {offsets = [2, 0], sizes = [1, 128], strides = [1, 1]} : vector<8x128xf32> to vector<1x128xf32>
    %152 = vector.broadcast %151 : vector<1x128xf32> to vector<8x128xf32>
    %153 = arith.mulf %150, %152 : vector<8x128xf32>
    %154 = arith.addf %149, %153 : vector<8x128xf32>
    %155 = vector.extract_strided_slice %140 {offsets = [24, 0], sizes = [8, 128], strides = [1, 1]} : vector<64x128xf32> to vector<8x128xf32>
    %156 = vector.extract_strided_slice %131 {offsets = [3, 0], sizes = [1, 128], strides = [1, 1]} : vector<8x128xf32> to vector<1x128xf32>
    %157 = vector.broadcast %156 : vector<1x128xf32> to vector<8x128xf32>
    %158 = arith.mulf %155, %157 : vector<8x128xf32>
    %159 = arith.addf %154, %158 : vector<8x128xf32>
    %160 = vector.extract_strided_slice %140 {offsets = [32, 0], sizes = [8, 128], strides = [1, 1]} : vector<64x128xf32> to vector<8x128xf32>
    %161 = vector.extract_strided_slice %131 {offsets = [4, 0], sizes = [1, 128], strides = [1, 1]} : vector<8x128xf32> to vector<1x128xf32>
    %162 = vector.broadcast %161 : vector<1x128xf32> to vector<8x128xf32>
    %163 = arith.mulf %160, %162 : vector<8x128xf32>
    %164 = arith.addf %159, %163 : vector<8x128xf32>
    %165 = vector.extract_strided_slice %140 {offsets = [40, 0], sizes = [8, 128], strides = [1, 1]} : vector<64x128xf32> to vector<8x128xf32>
    %166 = vector.extract_strided_slice %131 {offsets = [5, 0], sizes = [1, 128], strides = [1, 1]} : vector<8x128xf32> to vector<1x128xf32>
    %167 = vector.broadcast %166 : vector<1x128xf32> to vector<8x128xf32>
    %168 = arith.mulf %165, %167 : vector<8x128xf32>
    %169 = arith.addf %164, %168 : vector<8x128xf32>
    %170 = vector.extract_strided_slice %140 {offsets = [48, 0], sizes = [8, 128], strides = [1, 1]} : vector<64x128xf32> to vector<8x128xf32>
    %171 = vector.extract_strided_slice %131 {offsets = [6, 0], sizes = [1, 128], strides = [1, 1]} : vector<8x128xf32> to vector<1x128xf32>
    %172 = vector.broadcast %171 : vector<1x128xf32> to vector<8x128xf32>
    %173 = arith.mulf %170, %172 : vector<8x128xf32>
    %174 = arith.addf %169, %173 : vector<8x128xf32>
    %175 = vector.extract_strided_slice %140 {offsets = [56, 0], sizes = [8, 128], strides = [1, 1]} : vector<64x128xf32> to vector<8x128xf32>
    %176 = vector.extract_strided_slice %131 {offsets = [7, 0], sizes = [1, 128], strides = [1, 1]} : vector<8x128xf32> to vector<1x128xf32>
    %177 = vector.broadcast %176 : vector<1x128xf32> to vector<8x128xf32>
    %178 = arith.mulf %175, %177 : vector<8x128xf32>
    %179 = arith.addf %174, %178 : vector<8x128xf32>
    %c0_26 = arith.constant 0 : index
    %c0_27 = arith.constant 0 : index
    %c0_28 = arith.constant 0 : index
    %180 = vector.load %arg5[%c0_26, %c0_27, %c0_28] : memref<1x8x128xf32, #tpu.memory_space<vmem>>, vector<1x8x128xf32>
    %181 = vector.shape_cast %180 : vector<1x8x128xf32> to vector<8x128xf32>
    %182 = vector.shape_cast %179 : vector<8x128xf32> to vector<1x8x128xf32>
    tpu.vector_store %arg5[%c0_26, %c0_27, %c0_28], %182 {strides = array<i32>} : memref<1x8x128xf32, #tpu.memory_space<vmem>>, vector<1x8x128xf32>,
    return
  }
  func.func @transform_0(%arg0: i32, %arg1: i32) -> (i32, i32) {
    %c0_i32 = arith.constant 0 : i32
    %c0_i32_0 = arith.constant 0 : i32
    %c0_i32_1 = arith.constant 0 : i32
    return %c0_i32, %c0_i32_0 : i32, i32
  }
  func.func @transform_1(%arg0: i32, %arg1: i32) -> (i32, i32) {
    %c0_i32 = arith.constant 0 : i32
    %c0_i32_0 = arith.constant 0 : i32
    return %c0_i32, %arg1 : i32, i32
  }
  func.func @transform_2(%arg0: i32, %arg1: i32) -> (i32, i32, i32) {
    %c0_i32 = arith.constant 0 : i32
    %c0_i32_0 = arith.constant 0 : i32
    %c0_i32_1 = arith.constant 0 : i32
    return %arg0, %c0_i32, %c0_i32_0 : i32, i32, i32
  }
  func.func @transform_3(%arg0: i32, %arg1: i32) -> (i32, i32, i32) {
    %c0_i32 = arith.constant 0 : i32
    %c0_i32_0 = arith.constant 0 : i32
    return %arg0, %c0_i32, %arg1 : i32, i32, i32
  }
}

</mosaic_0001>

<llo_original>
// kernel: tpu_custom_call.1
$region0: #{tpu_custom_call.1}
  #allocation0 [shape = 'u32[]', space=smem, size = 0x4, offset = 0x4, fixed_abs, tag = 'smem constant byte address 0x4 - core index']
  #allocation1 [shape = 'u32[72,128]{1,0:T(1,128)}', space=vmem, size = 0x9000, scoped, tag = 'internal scratch']
  %s0 = inlined_call_operand.hbm [shape: f32[4,16], index: 0, kind: input, shape index: {}]
  %s1 = inlined_call_operand.hbm [shape: f32[3,128], index: 1, kind: input, shape index: {}]
  %s2 = inlined_call_operand.hbm [shape: f32[4,64,64], index: 2, kind: input, shape index: {}]
  %s3 = inlined_call_operand.hbm [shape: f32[4,8,128], index: 3, kind: output, shape index: {}]
  %s4 = sld [smem:[#allocation0]]
  $region57: #{tpu_custom_call.1} parent=0
    _
  %s6 = ssub.s32 1, %s4
  %s7 = scalar_select 0, %s6, %s4
  $region1: #{tpu_custom_call.1} parent=0
    #allocation2 [shape = 'u8[2048]{0}', space=smem, size = 0x800, scoped, tag = 'input window, operand 0, single buffered']
    #allocation3 [shape = 's32[2]{0}', space=sflag, size = 0x8, scoped, tag = 'scoped memory for tpu_custom_call.1']
    #allocation4 [shape = 's32[2]{0}', space=sflag, size = 0x8, scoped, tag = 'scoped memory for tpu_custom_call.1']
    #allocation5 [shape = 's32[2]{0}', space=sflag, size = 0x8, scoped, tag = 'scoped memory for tpu_custom_call.1']
    #allocation6 [shape = 'u8[2048]{0}', space=vmem, size = 0x800, scoped, tag = 'input window, operand 1, single buffered']
    #allocation7 [shape = 'u8[65536]{0}', space=vmem, size = 0x10000, scoped, tag = 'input window, operand 2']
    #allocation8 [shape = 's32[2]{0}', space=sflag, size = 0x8, scoped, tag = 'scoped memory for tpu_custom_call.1']
    #allocation9 [shape = 'u8[8192]{0}', space=vmem, size = 0x2000, scoped, tag = 'output window, operand 0']
    %8 = vsyncpa [#allocation5], 0
    %9 = vsyncpa [#allocation3], 0
    %10 = vsyncpa [#allocation8], 0
    %s11 = scalar_lea.sflag [#allocation8], 1
    %12 = vsyncpa %s11, 0
    %13 = vsyncpa [#allocation4], 0
    %s14 = scalar_lea.sflag [#allocation4], 1
    %15 = vsyncpa %s14, 0
    loop: start=0, step=1, limit=6
    $region2: #{tpu_custom_call.1} parent=1 // loop_pre_header
      _
    $region3: #{tpu_custom_call.1} parent=1 // loop_header
      %s17 = sphi 0, %s21
      %p18 = scmp.ge.s32.totalorder %s17, 6
      %s24 = sphi 0, %s36
      %s25 = sphi 0, %s32
      %s26 = sphi 0, %s24
      %s27 = sphi 0, %s25
      %s28 = sphi 0, %s26
      %s29 = sphi 0, %s27
      %s37 = sphi 0, %s37
      %s39 = sphi 0, %s37
      %s40 = sphi 0, %s39
      %s54 = sphi 0, %s40
      %s60 = sphi 0, %s62
      %s63 = sphi 0, %s60
      %s64 = sphi 0, %s63
      %s80 = sphi 0, %s64
      %s86 = sphi 0, %s88
      %s89 = sphi 0, %s86
      %s90 = sphi 0, %s89
      %s106 = sphi 0, %s90
      %s114 = sphi 0, %s116
      %s117 = sphi 0, %s114
      %s118 = sphi 0, %s117
      %s134 = sphi 0, %s118
    $region4: #{tpu_custom_call.1} parent=1 // loop_header_branch
      %20 = sbr.rel (%p18) target = $region8
    $region5: #{tpu_custom_call.1} parent=1 // loop_body
      %s22 = ssub.s32 %s17, 1
      %s23 = ssub.s32 %s17, 2
      %s30 = sadd.s32 1, %s25
      %p31 = scmp.ge.s32.totalorder %s30, 1
      %s32 = scalar_select %p31, 0, %s30
      %s33 = sadd.s32 1, %s24
      %s34 = scalar_select %p31, %s33, %s24
      %p35 = scmp.ge.s32.totalorder %s34, 4
      %s36 = scalar_select %p35, 0, %s34
      %s38 = sadd.s32 %s37, 1
      %p41 = scmp.eq.s32.totalorder %s17, 3
      %p42 = scmp.ne.s32.totalorder %s37, %s39
      %p43 = scmp.eq.s32.totalorder %s17, 0
      %p44 = por %p42, %p43
      %p45 = scmp.ne.s32.totalorder %s37, %s39
      %p46 = scmp.eq.s32.totalorder %s22, 3
      %p47 = por %p45, %p46
      %p48 = scmp.ne.s32.totalorder %s39, %s40
      %p49 = scmp.eq.s32.totalorder %s22, 0
      %p50 = por %p48, %p49
      %p51 = scmp.ne.s32.totalorder %s39, %s40
      %p52 = scmp.eq.s32.totalorder %s23, 3
      %p53 = por %p51, %p52
      %p55 = scmp.ne.s32.totalorder %s40, %s54
      %p56 = scmp.eq.s32.totalorder %s23, 0
      %p57 = por %p55, %p56
      %s58 = ssub.s32 %s25, %s32
      %p59 = scmp.eq.s32.totalorder %s58, 0
      %s61 = sadd.s32 %s60, 1
      %s62 = scalar_select %p59, %s60, %s61
      %p65 = pneg %p59
      %p66 = scmp.eq.s32.totalorder %s17, 3
      %p67 = por %p65, %p66
      %p68 = scmp.ne.s32.totalorder %s60, %s63
      %p69 = scmp.eq.s32.totalorder %s17, 0
      %p70 = por %p68, %p69
      %p71 = scmp.ne.s32.totalorder %s60, %s63
      %p72 = scmp.eq.s32.totalorder %s22, 3
      %p73 = por %p71, %p72
      %p74 = scmp.ne.s32.totalorder %s63, %s64
      %p75 = scmp.eq.s32.totalorder %s22, 0
      %p76 = por %p74, %p75
      %p77 = scmp.ne.s32.totalorder %s63, %s64
      %p78 = scmp.eq.s32.totalorder %s23, 3
      %p79 = por %p77, %p78
      %p81 = scmp.ne.s32.totalorder %s64, %s80
      %p82 = scmp.eq.s32.totalorder %s23, 0
      %p83 = por %p81, %p82
      %s84 = ssub.s32 %s24, %s36
      %p85 = scmp.eq.s32.totalorder %s84, 0
      %s87 = sadd.s32 %s86, 1
      %s88 = scalar_select %p85, %s86, %s87
      %p91 = pneg %p85
      %p92 = scmp.eq.s32.totalorder %s17, 3
      %p93 = por %p91, %p92
      %p94 = scmp.ne.s32.totalorder %s86, %s89
      %p95 = scmp.eq.s32.totalorder %s17, 0
      %p96 = por %p94, %p95
      %p97 = scmp.ne.s32.totalorder %s86, %s89
      %p98 = scmp.eq.s32.totalorder %s22, 3
      %p99 = por %p97, %p98
      %p100 = scmp.ne.s32.totalorder %s89, %s90
      %p101 = scmp.eq.s32.totalorder %s22, 0
      %p102 = por %p100, %p101
      %p103 = scmp.ne.s32.totalorder %s89, %s90
      %p104 = scmp.eq.s32.totalorder %s23, 3
      %p105 = por %p103, %p104
      %p107 = scmp.ne.s32.totalorder %s90, %s106
      %p108 = scmp.eq.s32.totalorder %s23, 0
      %p109 = por %p107, %p108
      %s110 = ssub.s32 %s24, %s36
      %s111 = ssub.s32 %s25, %s32
      %s112 = sor.u32 %s110, %s111
      %p113 = scmp.eq.s32.totalorder %s112, 0
      %s115 = sadd.s32 %s114, 1
      %s116 = scalar_select %p113, %s114, %s115
      %p119 = pneg %p113
      %p120 = scmp.eq.s32.totalorder %s17, 3
      %p121 = por %p119, %p120
      %p122 = scmp.ne.s32.totalorder %s114, %s117
      %p123 = scmp.eq.s32.totalorder %s17, 0
      %p124 = por %p122, %p123
      %p125 = scmp.ne.s32.totalorder %s114, %s117
      %p126 = scmp.eq.s32.totalorder %s22, 3
      %p127 = por %p125, %p126
      %p128 = scmp.ne.s32.totalorder %s117, %s118
      %p129 = scmp.eq.s32.totalorder %s22, 0
      %p130 = por %p128, %p129
      %p131 = scmp.ne.s32.totalorder %s117, %s118
      %p132 = scmp.eq.s32.totalorder %s23, 3
      %p133 = por %p131, %p132
      %p135 = scmp.ne.s32.totalorder %s118, %s134
      %p136 = scmp.eq.s32.totalorder %s23, 0
      %p137 = por %p135, %p136
      %p138 = scmp.le.s32.totalorder 1, %s17
      %p139 = scmp.lt.s32.totalorder %s17, 5
      %p140 = pnand %p138, %p139
      %p141 = pneg %p140
      // Predicated region
      $region9: #{tpu_custom_call.1} parent=5 // pred_check
        _
      $region10: #{tpu_custom_call.1} parent=5 // pred_check_branch
        %143 = sbr.rel (%p140) target = $region12
      $region11: #{tpu_custom_call.1} parent=5 // pred_region
        %s144 = ssub.s32 %s17, 1
        // Predicated region
        $region13: #{tpu_custom_call.1} parent=11 // pred_check
          %p145 = pneg %p50
        $region14: #{tpu_custom_call.1} parent=11 // pred_check_branch
          %147 = sbr.rel (%p145) target = $region16
        $region15: #{tpu_custom_call.1} parent=11 // pred_region
          %149 = vsyncadd [#allocation5], 0
          %s151 = sshll.u32 %s0, 4
          %s152 = int_to_ptr.hbm [resolvable:$true] %s151
          %154 = dma.hbm_to_smem %s152, 64, [#allocation2], [#allocation5]
        $region16: #{tpu_custom_call.1} parent=11 // pred_fallthru
          _
        // Predicated region
        $region17: #{tpu_custom_call.1} parent=11 // pred_check
          %p155 = pneg %p76
        $region18: #{tpu_custom_call.1} parent=11 // pred_check_branch
          %157 = sbr.rel (%p155) target = $region20
        $region19: #{tpu_custom_call.1} parent=11 // pred_region
          %159 = vsyncadd [#allocation3], 0
          %s160 = smul.addr %s27, 4
          %s161 = scalar_lea.hbm %s1, %s160
          %s163 = sshll.u32 %s161, 4
          %s164 = int_to_ptr.hbm [resolvable:$true] %s163
          %s165 = sshll.u32 [#allocation6], 4
          %s166 = int_to_ptr.vmem [resolvable:$true] %s165
          %168 = dma.hbm_to_vmem [thread:$0]  %s164, 64, %s166, [#allocation3]
        $region20: #{tpu_custom_call.1} parent=11 // pred_fallthru
          _
      $region12: #{tpu_custom_call.1} parent=5 // pred_fallthru
        _
      %p169 = scmp.lt.s32.totalorder %s17, 4
      // Predicated region
      $region21: #{tpu_custom_call.1} parent=5 // pred_check
        %p170 = pneg %p169
      $region22: #{tpu_custom_call.1} parent=5 // pred_check_branch
        %172 = sbr.rel (%p170) target = $region24
      $region23: #{tpu_custom_call.1} parent=5 // pred_region
        // Predicated region
        $region25: #{tpu_custom_call.1} parent=23 // pred_check
          %p173 = pneg %p96
        $region26: #{tpu_custom_call.1} parent=23 // pred_check_branch
          %175 = sbr.rel (%p173) target = $region28
        $region27: #{tpu_custom_call.1} parent=23 // pred_region
          %s176 = sand.u32 %s86, 1
          %s177 = scalar_lea.sflag [#allocation8], %s176
          %s178 = sand.u32 %s86, 1
          %s179 = smul.addr %s178, 64
          %s180 = scalar_lea.vmem [#allocation7], %s179
          %182 = vsyncadd %s177, 0
          %s183 = smul.addr %s24, 8
          %s184 = smul.addr %s183, 8
          %s185 = scalar_lea.hbm %s2, %s184
          %s186 = sshll.u32 %s185, 4
          %s187 = int_to_ptr.hbm [resolvable:$true] %s186
          %s188 = sshll.u32 %s180, 4
          %s189 = int_to_ptr.vmem [resolvable:$true] %s188
          %194 = dma.hbm_to_vmem [thread:$0]  %s187, 1024, %s189, %s177, 128, 128, 8
        $region28: #{tpu_custom_call.1} parent=23 // pred_fallthru
          _
      $region24: #{tpu_custom_call.1} parent=5 // pred_fallthru
        _
      %p195 = scmp.le.s32.totalorder 1, %s17
      %p196 = scmp.lt.s32.totalorder %s17, 5
      %p197 = pnand %p195, %p196
      %p198 = pneg %p197
      // Predicated region
      $region29: #{tpu_custom_call.1} parent=5 // pred_check
        _
      $region30: #{tpu_custom_call.1} parent=5 // pred_check_branch
        %200 = sbr.rel (%p197) target = $region32
      $region31: #{tpu_custom_call.1} parent=5 // pred_region
        %s201 = ssub.s32 %s17, 1
        // Predicated region
        $region33: #{tpu_custom_call.1} parent=31 // pred_check
          %p202 = pneg %p50
        $region34: #{tpu_custom_call.1} parent=31 // pred_check_branch
          %204 = sbr.rel (%p202) target = $region36
        $region35: #{tpu_custom_call.1} parent=31 // pred_region
          %206 = dma.done [#allocation5], 64
        $region36: #{tpu_custom_call.1} parent=31 // pred_fallthru
          _
        // Predicated region
        $region37: #{tpu_custom_call.1} parent=31 // pred_check
          %p207 = pneg %p76
        $region38: #{tpu_custom_call.1} parent=31 // pred_check_branch
          %209 = sbr.rel (%p207) target = $region40
        $region39: #{tpu_custom_call.1} parent=31 // pred_region
          %211 = dma.done [#allocation3], 64
        $region40: #{tpu_custom_call.1} parent=31 // pred_fallthru
          _
        %s212 = sand.u32 %s89, 1
        %s213 = scalar_lea.sflag [#allocation8], %s212
        %s214 = sand.u32 %s89, 1
        %s215 = smul.addr %s214, 64
        %s216 = scalar_lea.vmem [#allocation7], %s215
        // Predicated region
        $region41: #{tpu_custom_call.1} parent=31 // pred_check
          %p217 = pneg %p102
        $region42: #{tpu_custom_call.1} parent=31 // pred_check_branch
          %219 = sbr.rel (%p217) target = $region44
        $region43: #{tpu_custom_call.1} parent=31 // pred_region
          %221 = dma.done %s213, 1024
        $region44: #{tpu_custom_call.1} parent=31 // pred_fallthru
          _
        %222 = sfence
        %p223 = pneg %p50
        %p224 = pneg %p47
        %p225 = pneg %p76
        %p226 = pneg %p73
        %s227 = sand.u32 %s89, 1
        %s228 = scalar_lea.sflag [#allocation8], %s227
        %s229 = sand.u32 %s89, 1
        %s230 = smul.addr %s229, 64
        %s231 = scalar_lea.vmem [#allocation7], %s230
        %p232 = pneg %p102
        %p233 = pneg %p99
        %p234 = pneg %p130
        %p235 = pneg %p127
        %s236 = sand.u32 %s117, 1
        %s237 = scalar_lea.sflag [#allocation4], %s236
        %s238 = sand.u32 %s117, 1
        %s239 = smul.addr %s238, 8
        %s240 = scalar_lea.vmem [#allocation9], %s239
        %v241 = vld [vmem:[#allocation6] sm:$0x1]
        %v242 = vld [vmem:[#allocation6 + $0x1] sm:$0x1]
        %v243 = vld [vmem:[#allocation6 + $0x2] sm:$0x1]
        %s244 = smul.u32 %s26, 128
        %s245 = sld [smem:[#allocation2 + %s244]]
        %v246 = vstv %s245
        %v247 = vmul.f32 %v246, %v241
        %s248 = sadd.s32 %s244, 1
        %s249 = sld [smem:[#allocation2 + %s248]]
        %v250 = vstv %s249
        %v251 = vmul.f32 %v250, %v242
        %v252 = vadd.f32 %v247, %v251
        %s253 = sadd.s32 %s244, 2
        %s254 = sld [smem:[#allocation2 + %s253]]
        %v255 = vstv %s254
        %v256 = vmul.f32 %v255, %v243
        %v257 = vadd.f32 %v252, %v256
        %s258 = sadd.s32 %s244, 3
        %s259 = sld [smem:[#allocation2 + %s258]]
        %v260 = vstv %s259
        %v261 = vadd.f32 %v257, %v260
        %s262 = sadd.s32 %s244, 4
        %s263 = sld [smem:[#allocation2 + %s262]]
        %v264 = vstv %s263
        %v265 = vmul.f32 %v264, %v241
        %s266 = sadd.s32 %s244, 5
        %s267 = sld [smem:[#allocation2 + %s266]]
        %v268 = vstv %s267
        %v269 = vmul.f32 %v268, %v242
        %v270 = vadd.f32 %v265, %v269
        %s271 = sadd.s32 %s244, 6
        %s272 = sld [smem:[#allocation2 + %s271]]
        %v273 = vstv %s272
        %v274 = vmul.f32 %v273, %v243
        %v275 = vadd.f32 %v270, %v274
        %s276 = sadd.s32 %s244, 7
        %s277 = sld [smem:[#allocation2 + %s276]]
        %v278 = vstv %s277
        %v279 = vadd.f32 %v275, %v278
        %s280 = sadd.s32 %s244, 8
        %s281 = sld [smem:[#allocation2 + %s280]]
        %v282 = vstv %s281
        %v283 = vmul.f32 %v282, %v241
        %s284 = sadd.s32 %s244, 9
        %s285 = sld [smem:[#allocation2 + %s284]]
        %v286 = vstv %s285
        %v287 = vmul.f32 %v286, %v242
        %v288 = vadd.f32 %v283, %v287
        %s289 = sadd.s32 %s244, 10
        %s290 = sld [smem:[#allocation2 + %s289]]
        %v291 = vstv %s290
        %v292 = vmul.f32 %v291, %v243
        %v293 = vadd.f32 %v288, %v292
        %s294 = sadd.s32 %s244, 11
        %s295 = sld [smem:[#allocation2 + %s294]]
        %v296 = vstv %s295
        %v297 = vadd.f32 %v293, %v296
        %v298 = vadd.f32 %v261, 1.0
        %v299 = vmul.f32 %v298, 0.5
        %v300 = vmul.f32 %v299, 7.0
        %v301 = vadd.f32 %v279, 1.0
        %v302 = vmul.f32 %v301, 0.5
        %v303 = vmul.f32 %v302, 7.0
        %v304 = vadd.f32 %v297, 1.0
        %v305 = vmul.f32 %v304, 0.5
        %v306 = vmul.f32 %v305, 7.0
        %v307 = vfloor.f32 %v300
        %v308 = vsub.f32 %v300, %v307
        %v309 = vcvt.f32.s32.to.zero.pseudo %v307
        %v310 = vlaneseq
        %v311 = vshrl.u32 %v310, 7
        %v312 = vperm.slane %v309, 0
        %vm313 = vcmp.eq.s32.totalorder %v311, %v312
        %v314 = vsub.f32 1.0, %v308
        %v315 = vadd.s32 %v309, 1
        %v316 = vperm.slane %v315, 0
        %vm317 = vcmp.eq.s32.totalorder %v311, %v316
        %v318 = vperm.slane %v308, 0
        %v319 = vsel %vm317, %v318, 0.0
        %v320 = vperm.slane %v314, 0
        %v321 = vsel %vm313, %v320, %v319
        %v322 = vfloor.f32 %v303
        %v323 = vsub.f32 %v303, %v322
        %v324 = vcvt.f32.s32.to.zero.pseudo %v322
        %v325 = vperm.slane %v324, 0
        %vm326 = vcmp.eq.s32.totalorder %v311, %v325
        %v327 = vsub.f32 1.0, %v323
        %v328 = vadd.s32 %v324, 1
        %v329 = vperm.slane %v328, 0
        %vm330 = vcmp.eq.s32.totalorder %v311, %v329
        %v331 = vperm.slane %v323, 0
        %v332 = vsel %vm330, %v331, 0.0
        %v333 = vperm.slane %v327, 0
        %v334 = vsel %vm326, %v333, %v332
        %v335 = vfloor.f32 %v306
        %v336 = vsub.f32 %v306, %v335
        %v337 = vcvt.f32.s32.to.zero.pseudo %v335
        %v338 = vperm.slane %v337, 0
        %vm339 = vcmp.eq.s32.totalorder %v311, %v338
        %v340 = vsub.f32 1.0, %v336
        %v341 = vadd.s32 %v337, 1
        %v342 = vperm.slane %v341, 0
        %vm343 = vcmp.eq.s32.totalorder %v311, %v342
        %v344 = vperm.slane %v336, 0
        %v345 = vsel %vm343, %v344, 0.0
        %v346 = vperm.slane %v340, 0
        %v347 = vsel %vm339, %v346, %v345
        %v349 = vrot.slane %v334, 1
        %v350 = vrot.slane %v334, 2
        %v351 = vrot.slane %v334, 3
        %v352 = vrot.slane %v334, 4
        %v353 = vrot.slane %v334, 5
        %v354 = vrot.slane %v334, 6
        %v355 = vrot.slane %v334, 7
        %v356 = vperm.slane %v334, 0
        %v357 = vperm.slane %v349, 0
        %v358 = vperm.slane %v350, 0
        %v359 = vperm.slane %v351, 0
        %v360 = vperm.slane %v352, 0
        %v361 = vperm.slane %v353, 0
        %v362 = vperm.slane %v354, 0
        %v363 = vperm.slane %v355, 0
        %v372 = vmul.f32 %v356, %v321
        %v373 = vmul.f32 %v357, %v321
        %v374 = vmul.f32 %v358, %v321
        %v375 = vmul.f32 %v359, %v321
        %v376 = vmul.f32 %v360, %v321
        %v377 = vmul.f32 %v361, %v321
        %v378 = vmul.f32 %v362, %v321
        %v379 = vmul.f32 %v363, %v321
        %v380 = vld [vmem:[%s216] sm:$0xff]
        %v381 = vld [vmem:[%s216 + $0x8] sm:$0xff]
        %v382 = vld [vmem:[%s216 + $0x10] sm:$0xff]
        %v383 = vld [vmem:[%s216 + $0x18] sm:$0xff]
        %v384 = vld [vmem:[%s216 + $0x20] sm:$0xff]
        %v385 = vld [vmem:[%s216 + $0x28] sm:$0xff]
        %v386 = vld [vmem:[%s216 + $0x30] sm:$0xff]
        %v387 = vld [vmem:[%s216 + $0x38] sm:$0xff]
        %vm388 = vcmask 523264
        %v390 = vsel %vm388, %v380, 0
        %v393 = vsel %vm388, %v381, 0
        %v396 = vsel %vm388, %v382, 0
        %v399 = vsel %vm388, %v383, 0
        %v402 = vsel %vm388, %v384, 0
        %v405 = vsel %vm388, %v385, 0
        %v408 = vsel %vm388, %v386, 0
        %v411 = vsel %vm388, %v387, 0
        %413 = vmatpush.msra.mxu0 0.0
        %414 = vmatpush.msra.mxu0 0.0
        %415 = vmatpush.msra.mxu0 0.0
        %416 = vmatpush.msra.mxu0 0.0
        %417 = vmatpush.msra.mxu0 0.0
        %418 = vmatpush.msra.mxu0 0.0
        %419 = vmatpush.msra.mxu0 0.0
        %420 = vmatpush.msra.mxu0 0.0
        %v421 = vand.u32 %v379, 4294901760
        %422 = vmatpush.msra.mxu0 %v421
        %v423 = vand.u32 %v378, 4294901760
        %424 = vmatpush.msra.mxu0 %v423
        %v425 = vand.u32 %v377, 4294901760
        %426 = vmatpush.msra.mxu0 %v425
        %v427 = vand.u32 %v376, 4294901760
        %428 = vmatpush.msra.mxu0 %v427
        %v429 = vand.u32 %v375, 4294901760
        %430 = vmatpush.msra.mxu0 %v429
        %v431 = vand.u32 %v374, 4294901760
        %432 = vmatpush.msra.mxu0 %v431
        %v433 = vand.u32 %v373, 4294901760
        %434 = vmatpush.msra.mxu0 %v433
        %v435 = vand.u32 %v372, 4294901760
        %436 = vmatpush.msra.mxu0 %v435
        %v437 = vand.u32 %v390, 4294901760
        %v438 = vsub.f32 %v390, %v437
        %v439 = vand.u32 %v438, 4294901760
        %v440 = vsub.f32 %v438, %v439
        %v441 = vand.u32 %v440, 4294901760
        %442 = vmatmul.f32.gmra.mxu0 %v441
        %v443 = vpop.f32.mrf.mxu0
        %v444 = vadd.f32 0.0, %v443
        %v445 = vand.u32 %v393, 4294901760
        %v446 = vsub.f32 %v393, %v445
        %v447 = vand.u32 %v446, 4294901760
        %v448 = vsub.f32 %v446, %v447
        %v449 = vand.u32 %v448, 4294901760
        %450 = vmatmul.f32.gmra.mxu0 %v449
        %v451 = vpop.f32.mrf.mxu0
        %v452 = vadd.f32 0.0, %v451
        %v453 = vand.u32 %v396, 4294901760
        %v454 = vsub.f32 %v396, %v453
        %v455 = vand.u32 %v454, 4294901760
        %v456 = vsub.f32 %v454, %v455
        %v457 = vand.u32 %v456, 4294901760
        %458 = vmatmul.f32.gmra.mxu0 %v457
        %v459 = vpop.f32.mrf.mxu0
        %v460 = vadd.f32 0.0, %v459
        %v461 = vand.u32 %v399, 4294901760
        %v462 = vsub.f32 %v399, %v461
        %v463 = vand.u32 %v462, 4294901760
        %v464 = vsub.f32 %v462, %v463
        %v465 = vand.u32 %v464, 4294901760
        %466 = vmatmul.f32.gmra.mxu0 %v465
        %v467 = vpop.f32.mrf.mxu0
        %v468 = vadd.f32 0.0, %v467
        %v469 = vand.u32 %v402, 4294901760
        %v470 = vsub.f32 %v402, %v469
        %v471 = vand.u32 %v470, 4294901760
        %v472 = vsub.f32 %v470, %v471
        %v473 = vand.u32 %v472, 4294901760
        %474 = vmatmul.f32.gmra.mxu0 %v473
        %v475 = vpop.f32.mrf.mxu0
        %v476 = vadd.f32 0.0, %v475
        %v477 = vand.u32 %v405, 4294901760
        %v478 = vsub.f32 %v405, %v477
        %v479 = vand.u32 %v478, 4294901760
        %v480 = vsub.f32 %v478, %v479
        %v481 = vand.u32 %v480, 4294901760
        %482 = vmatmul.f32.gmra.mxu0 %v481
        %v483 = vpop.f32.mrf.mxu0
        %v484 = vadd.f32 0.0, %v483
        %v485 = vand.u32 %v408, 4294901760
        %v486 = vsub.f32 %v408, %v485
        %v487 = vand.u32 %v486, 4294901760
        %v488 = vsub.f32 %v486, %v487
        %v489 = vand.u32 %v488, 4294901760
        %490 = vmatmul.f32.gmra.mxu0 %v489
        %v491 = vpop.f32.mrf.mxu0
        %v492 = vadd.f32 0.0, %v491
        %v493 = vand.u32 %v411, 4294901760
        %v494 = vsub.f32 %v411, %v493
        %v495 = vand.u32 %v494, 4294901760
        %v496 = vsub.f32 %v494, %v495
        %v497 = vand.u32 %v496, 4294901760
        %498 = vmatmul.f32.gmra.mxu0 %v497
        %v499 = vpop.f32.mrf.mxu0
        %v500 = vadd.f32 0.0, %v499
        %501 = vdwg.mxu0
        %502 = vmatpush.msra.mxu0 0.0
        %503 = vmatpush.msra.mxu0 0.0
        %504 = vmatpush.msra.mxu0 0.0
        %505 = vmatpush.msra.mxu0 0.0
        %506 = vmatpush.msra.mxu0 0.0
        %507 = vmatpush.msra.mxu0 0.0
        %508 = vmatpush.msra.mxu0 0.0
        %509 = vmatpush.msra.mxu0 0.0
        %v510 = vand.u32 %v379, 4294901760
        %v511 = vsub.f32 %v379, %v510
        %v512 = vand.u32 %v511, 4294901760
        %v513 = vsub.f32 %v511, %v512
        %v514 = vand.u32 %v513, 4294901760
        %515 = vmatpush.msra.mxu0 %v514
        %v516 = vand.u32 %v378, 4294901760
        %v517 = vsub.f32 %v378, %v516
        %v518 = vand.u32 %v517, 4294901760
        %v519 = vsub.f32 %v517, %v518
        %v520 = vand.u32 %v519, 4294901760
        %521 = vmatpush.msra.mxu0 %v520
        %v522 = vand.u32 %v377, 4294901760
        %v523 = vsub.f32 %v377, %v522
        %v524 = vand.u32 %v523, 4294901760
        %v525 = vsub.f32 %v523, %v524
        %v526 = vand.u32 %v525, 4294901760
        %527 = vmatpush.msra.mxu0 %v526
        %v528 = vand.u32 %v376, 4294901760
        %v529 = vsub.f32 %v376, %v528
        %v530 = vand.u32 %v529, 4294901760
        %v531 = vsub.f32 %v529, %v530
        %v532 = vand.u32 %v531, 4294901760
        %533 = vmatpush.msra.mxu0 %v532
        %v534 = vand.u32 %v375, 4294901760
        %v535 = vsub.f32 %v375, %v534
        %v536 = vand.u32 %v535, 4294901760
        %v537 = vsub.f32 %v535, %v536
        %v538 = vand.u32 %v537, 4294901760
        %539 = vmatpush.msra.mxu0 %v538
        %v540 = vand.u32 %v374, 4294901760
        %v541 = vsub.f32 %v374, %v540
        %v542 = vand.u32 %v541, 4294901760
        %v543 = vsub.f32 %v541, %v542
        %v544 = vand.u32 %v543, 4294901760
        %545 = vmatpush.msra.mxu0 %v544
        %v546 = vand.u32 %v373, 4294901760
        %v547 = vsub.f32 %v373, %v546
        %v548 = vand.u32 %v547, 4294901760
        %v549 = vsub.f32 %v547, %v548
        %v550 = vand.u32 %v549, 4294901760
        %551 = vmatpush.msra.mxu0 %v550
        %v552 = vand.u32 %v372, 4294901760
        %v553 = vsub.f32 %v372, %v552
        %v554 = vand.u32 %v553, 4294901760
        %v555 = vsub.f32 %v553, %v554
        %v556 = vand.u32 %v555, 4294901760
        %557 = vmatpush.msra.mxu0 %v556
        %v558 = vand.u32 %v390, 4294901760
        %559 = vmatmul.f32.gmra.mxu0 %v558
        %v560 = vpop.f32.mrf.mxu0
        %v561 = vadd.f32 %v444, %v560
        %v562 = vand.u32 %v393, 4294901760
        %563 = vmatmul.f32.gmra.mxu0 %v562
        %v564 = vpop.f32.mrf.mxu0
        %v565 = vadd.f32 %v452, %v564
        %v566 = vand.u32 %v396, 4294901760
        %567 = vmatmul.f32.gmra.mxu0 %v566
        %v568 = vpop.f32.mrf.mxu0
        %v569 = vadd.f32 %v460, %v568
        %v570 = vand.u32 %v399, 4294901760
        %571 = vmatmul.f32.gmra.mxu0 %v570
        %v572 = vpop.f32.mrf.mxu0
        %v573 = vadd.f32 %v468, %v572
        %v574 = vand.u32 %v402, 4294901760
        %575 = vmatmul.f32.gmra.mxu0 %v574
        %v576 = vpop.f32.mrf.mxu0
        %v577 = vadd.f32 %v476, %v576
        %v578 = vand.u32 %v405, 4294901760
        %579 = vmatmul.f32.gmra.mxu0 %v578
        %v580 = vpop.f32.mrf.mxu0
        %v581 = vadd.f32 %v484, %v580
        %v582 = vand.u32 %v408, 4294901760
        %583 = vmatmul.f32.gmra.mxu0 %v582
        %v584 = vpop.f32.mrf.mxu0
        %v585 = vadd.f32 %v492, %v584
        %v586 = vand.u32 %v411, 4294901760
        %587 = vmatmul.f32.gmra.mxu0 %v586
        %v588 = vpop.f32.mrf.mxu0
        %v589 = vadd.f32 %v500, %v588
        %590 = vdwg.mxu0
        %591 = vmatpush.msra.mxu0 0.0
        %592 = vmatpush.msra.mxu0 0.0
        %593 = vmatpush.msra.mxu0 0.0
        %594 = vmatpush.msra.mxu0 0.0
        %595 = vmatpush.msra.mxu0 0.0
        %596 = vmatpush.msra.mxu0 0.0
        %597 = vmatpush.msra.mxu0 0.0
        %598 = vmatpush.msra.mxu0 0.0
        %v599 = vand.u32 %v379, 4294901760
        %v600 = vsub.f32 %v379, %v599
        %601 = vmatpush.msra.mxu0 %v600
        %v602 = vand.u32 %v378, 4294901760
        %v603 = vsub.f32 %v378, %v602
        %604 = vmatpush.msra.mxu0 %v603
        %v605 = vand.u32 %v377, 4294901760
        %v606 = vsub.f32 %v377, %v605
        %607 = vmatpush.msra.mxu0 %v606
        %v608 = vand.u32 %v376, 4294901760
        %v609 = vsub.f32 %v376, %v608
        %610 = vmatpush.msra.mxu0 %v609
        %v611 = vand.u32 %v375, 4294901760
        %v612 = vsub.f32 %v375, %v611
        %613 = vmatpush.msra.mxu0 %v612
        %v614 = vand.u32 %v374, 4294901760
        %v615 = vsub.f32 %v374, %v614
        %616 = vmatpush.msra.mxu0 %v615
        %v617 = vand.u32 %v373, 4294901760
        %v618 = vsub.f32 %v373, %v617
        %619 = vmatpush.msra.mxu0 %v618
        %v620 = vand.u32 %v372, 4294901760
        %v621 = vsub.f32 %v372, %v620
        %622 = vmatpush.msra.mxu0 %v621
        %v623 = vand.u32 %v390, 4294901760
        %v624 = vsub.f32 %v390, %v623
        %625 = vmatmul.f32.gmra.mxu0 %v624
        %v626 = vpop.f32.mrf.mxu0
        %v627 = vadd.f32 %v561, %v626
        %v628 = vand.u32 %v393, 4294901760
        %v629 = vsub.f32 %v393, %v628
        %630 = vmatmul.f32.gmra.mxu0 %v629
        %v631 = vpop.f32.mrf.mxu0
        %v632 = vadd.f32 %v565, %v631
        %v633 = vand.u32 %v396, 4294901760
        %v634 = vsub.f32 %v396, %v633
        %635 = vmatmul.f32.gmra.mxu0 %v634
        %v636 = vpop.f32.mrf.mxu0
        %v637 = vadd.f32 %v569, %v636
        %v638 = vand.u32 %v399, 4294901760
        %v639 = vsub.f32 %v399, %v638
        %640 = vmatmul.f32.gmra.mxu0 %v639
        %v641 = vpop.f32.mrf.mxu0
        %v642 = vadd.f32 %v573, %v641
        %v643 = vand.u32 %v402, 4294901760
        %v644 = vsub.f32 %v402, %v643
        %645 = vmatmul.f32.gmra.mxu0 %v644
        %v646 = vpop.f32.mrf.mxu0
        %v647 = vadd.f32 %v577, %v646
        %v648 = vand.u32 %v405, 4294901760
        %v649 = vsub.f32 %v405, %v648
        %650 = vmatmul.f32.gmra.mxu0 %v649
        %v651 = vpop.f32.mrf.mxu0
        %v652 = vadd.f32 %v581, %v651
        %v653 = vand.u32 %v408, 4294901760
        %v654 = vsub.f32 %v408, %v653
        %655 = vmatmul.f32.gmra.mxu0 %v654
        %v656 = vpop.f32.mrf.mxu0
        %v657 = vadd.f32 %v585, %v656
        %v658 = vand.u32 %v411, 4294901760
        %v659 = vsub.f32 %v411, %v658
        %660 = vmatmul.f32.gmra.mxu0 %v659
        %v661 = vpop.f32.mrf.mxu0
        %v662 = vadd.f32 %v589, %v661
        %663 = vdwg.mxu0
        %664 = vmatpush.msra.mxu0 0.0
        %665 = vmatpush.msra.mxu0 0.0
        %666 = vmatpush.msra.mxu0 0.0
        %667 = vmatpush.msra.mxu0 0.0
        %668 = vmatpush.msra.mxu0 0.0
        %669 = vmatpush.msra.mxu0 0.0
        %670 = vmatpush.msra.mxu0 0.0
        %671 = vmatpush.msra.mxu0 0.0
        %v672 = vand.u32 %v379, 4294901760
        %673 = vmatpush.msra.mxu0 %v672
        %v674 = vand.u32 %v378, 4294901760
        %675 = vmatpush.msra.mxu0 %v674
        %v676 = vand.u32 %v377, 4294901760
        %677 = vmatpush.msra.mxu0 %v676
        %v678 = vand.u32 %v376, 4294901760
        %679 = vmatpush.msra.mxu0 %v678
        %v680 = vand.u32 %v375, 4294901760
        %681 = vmatpush.msra.mxu0 %v680
        %v682 = vand.u32 %v374, 4294901760
        %683 = vmatpush.msra.mxu0 %v682
        %v684 = vand.u32 %v373, 4294901760
        %685 = vmatpush.msra.mxu0 %v684
        %v686 = vand.u32 %v372, 4294901760
        %687 = vmatpush.msra.mxu0 %v686
        %v688 = vand.u32 %v390, 4294901760
        %v689 = vsub.f32 %v390, %v688
        %v690 = vand.u32 %v689, 4294901760
        %691 = vmatmul.f32.gmra.mxu0 %v690
        %v692 = vpop.f32.mrf.mxu0
        %v693 = vadd.f32 %v627, %v692
        %v694 = vand.u32 %v393, 4294901760
        %v695 = vsub.f32 %v393, %v694
        %v696 = vand.u32 %v695, 4294901760
        %697 = vmatmul.f32.gmra.mxu0 %v696
        %v698 = vpop.f32.mrf.mxu0
        %v699 = vadd.f32 %v632, %v698
        %v700 = vand.u32 %v396, 4294901760
        %v701 = vsub.f32 %v396, %v700
        %v702 = vand.u32 %v701, 4294901760
        %703 = vmatmul.f32.gmra.mxu0 %v702
        %v704 = vpop.f32.mrf.mxu0
        %v705 = vadd.f32 %v637, %v704
        %v706 = vand.u32 %v399, 4294901760
        %v707 = vsub.f32 %v399, %v706
        %v708 = vand.u32 %v707, 4294901760
        %709 = vmatmul.f32.gmra.mxu0 %v708
        %v710 = vpop.f32.mrf.mxu0
        %v711 = vadd.f32 %v642, %v710
        %v712 = vand.u32 %v402, 4294901760
        %v713 = vsub.f32 %v402, %v712
        %v714 = vand.u32 %v713, 4294901760
        %715 = vmatmul.f32.gmra.mxu0 %v714
        %v716 = vpop.f32.mrf.mxu0
        %v717 = vadd.f32 %v647, %v716
        %v718 = vand.u32 %v405, 4294901760
        %v719 = vsub.f32 %v405, %v718
        %v720 = vand.u32 %v719, 4294901760
        %721 = vmatmul.f32.gmra.mxu0 %v720
        %v722 = vpop.f32.mrf.mxu0
        %v723 = vadd.f32 %v652, %v722
        %v724 = vand.u32 %v408, 4294901760
        %v725 = vsub.f32 %v408, %v724
        %v726 = vand.u32 %v725, 4294901760
        %727 = vmatmul.f32.gmra.mxu0 %v726
        %v728 = vpop.f32.mrf.mxu0
        %v729 = vadd.f32 %v657, %v728
        %v730 = vand.u32 %v411, 4294901760
        %v731 = vsub.f32 %v411, %v730
        %v732 = vand.u32 %v731, 4294901760
        %733 = vmatmul.f32.gmra.mxu0 %v732
        %v734 = vpop.f32.mrf.mxu0
        %v735 = vadd.f32 %v662, %v734
        %736 = vdwg.mxu0
        %737 = vmatpush.msra.mxu0 0.0
        %738 = vmatpush.msra.mxu0 0.0
        %739 = vmatpush.msra.mxu0 0.0
        %740 = vmatpush.msra.mxu0 0.0
        %741 = vmatpush.msra.mxu0 0.0
        %742 = vmatpush.msra.mxu0 0.0
        %743 = vmatpush.msra.mxu0 0.0
        %744 = vmatpush.msra.mxu0 0.0
        %v745 = vand.u32 %v379, 4294901760
        %v746 = vsub.f32 %v379, %v745
        %v747 = vand.u32 %v746, 4294901760
        %748 = vmatpush.msra.mxu0 %v747
        %v749 = vand.u32 %v378, 4294901760
        %v750 = vsub.f32 %v378, %v749
        %v751 = vand.u32 %v750, 4294901760
        %752 = vmatpush.msra.mxu0 %v751
        %v753 = vand.u32 %v377, 4294901760
        %v754 = vsub.f32 %v377, %v753
        %v755 = vand.u32 %v754, 4294901760
        %756 = vmatpush.msra.mxu0 %v755
        %v757 = vand.u32 %v376, 4294901760
        %v758 = vsub.f32 %v376, %v757
        %v759 = vand.u32 %v758, 4294901760
        %760 = vmatpush.msra.mxu0 %v759
        %v761 = vand.u32 %v375, 4294901760
        %v762 = vsub.f32 %v375, %v761
        %v763 = vand.u32 %v762, 4294901760
        %764 = vmatpush.msra.mxu0 %v763
        %v765 = vand.u32 %v374, 4294901760
        %v766 = vsub.f32 %v374, %v765
        %v767 = vand.u32 %v766, 4294901760
        %768 = vmatpush.msra.mxu0 %v767
        %v769 = vand.u32 %v373, 4294901760
        %v770 = vsub.f32 %v373, %v769
        %v771 = vand.u32 %v770, 4294901760
        %772 = vmatpush.msra.mxu0 %v771
        %v773 = vand.u32 %v372, 4294901760
        %v774 = vsub.f32 %v372, %v773
        %v775 = vand.u32 %v774, 4294901760
        %776 = vmatpush.msra.mxu0 %v775
        %v777 = vand.u32 %v390, 4294901760
        %778 = vmatmul.f32.gmra.mxu0 %v777
        %v779 = vpop.f32.mrf.mxu0
        %v780 = vadd.f32 %v693, %v779
        %v781 = vand.u32 %v393, 4294901760
        %782 = vmatmul.f32.gmra.mxu0 %v781
        %v783 = vpop.f32.mrf.mxu0
        %v784 = vadd.f32 %v699, %v783
        %v785 = vand.u32 %v396, 4294901760
        %786 = vmatmul.f32.gmra.mxu0 %v785
        %v787 = vpop.f32.mrf.mxu0
        %v788 = vadd.f32 %v705, %v787
        %v789 = vand.u32 %v399, 4294901760
        %790 = vmatmul.f32.gmra.mxu0 %v789
        %v791 = vpop.f32.mrf.mxu0
        %v792 = vadd.f32 %v711, %v791
        %v793 = vand.u32 %v402, 4294901760
        %794 = vmatmul.f32.gmra.mxu0 %v793
        %v795 = vpop.f32.mrf.mxu0
        %v796 = vadd.f32 %v717, %v795
        %v797 = vand.u32 %v405, 4294901760
        %798 = vmatmul.f32.gmra.mxu0 %v797
        %v799 = vpop.f32.mrf.mxu0
        %v800 = vadd.f32 %v723, %v799
        %v801 = vand.u32 %v408, 4294901760
        %802 = vmatmul.f32.gmra.mxu0 %v801
        %v803 = vpop.f32.mrf.mxu0
        %v804 = vadd.f32 %v729, %v803
        %v805 = vand.u32 %v411, 4294901760
        %806 = vmatmul.f32.gmra.mxu0 %v805
        %v807 = vpop.f32.mrf.mxu0
        %v808 = vadd.f32 %v735, %v807
        %809 = vdwg.mxu0
        %810 = vmatpush.msra.mxu0 0.0
        %811 = vmatpush.msra.mxu0 0.0
        %812 = vmatpush.msra.mxu0 0.0
        %813 = vmatpush.msra.mxu0 0.0
        %814 = vmatpush.msra.mxu0 0.0
        %815 = vmatpush.msra.mxu0 0.0
        %816 = vmatpush.msra.mxu0 0.0
        %817 = vmatpush.msra.mxu0 0.0
        %v818 = vand.u32 %v379, 4294901760
        %819 = vmatpush.msra.mxu0 %v818
        %v820 = vand.u32 %v378, 4294901760
        %821 = vmatpush.msra.mxu0 %v820
        %v822 = vand.u32 %v377, 4294901760
        %823 = vmatpush.msra.mxu0 %v822
        %v824 = vand.u32 %v376, 4294901760
        %825 = vmatpush.msra.mxu0 %v824
        %v826 = vand.u32 %v375, 4294901760
        %827 = vmatpush.msra.mxu0 %v826
        %v828 = vand.u32 %v374, 4294901760
        %829 = vmatpush.msra.mxu0 %v828
        %v830 = vand.u32 %v373, 4294901760
        %831 = vmatpush.msra.mxu0 %v830
        %v832 = vand.u32 %v372, 4294901760
        %833 = vmatpush.msra.mxu0 %v832
        %v834 = vand.u32 %v390, 4294901760
        %835 = vmatmul.f32.gmra.mxu0 %v834
        %v836 = vpop.f32.mrf.mxu0
        %v837 = vadd.f32 %v780, %v836
        %v838 = vand.u32 %v393, 4294901760
        %839 = vmatmul.f32.gmra.mxu0 %v838
        %v840 = vpop.f32.mrf.mxu0
        %v841 = vadd.f32 %v784, %v840
        %v842 = vand.u32 %v396, 4294901760
        %843 = vmatmul.f32.gmra.mxu0 %v842
        %v844 = vpop.f32.mrf.mxu0
        %v845 = vadd.f32 %v788, %v844
        %v846 = vand.u32 %v399, 4294901760
        %847 = vmatmul.f32.gmra.mxu0 %v846
        %v848 = vpop.f32.mrf.mxu0
        %v849 = vadd.f32 %v792, %v848
        %v850 = vand.u32 %v402, 4294901760
        %851 = vmatmul.f32.gmra.mxu0 %v850
        %v852 = vpop.f32.mrf.mxu0
        %v853 = vadd.f32 %v796, %v852
        %v854 = vand.u32 %v405, 4294901760
        %855 = vmatmul.f32.gmra.mxu0 %v854
        %v856 = vpop.f32.mrf.mxu0
        %v857 = vadd.f32 %v800, %v856
        %v858 = vand.u32 %v408, 4294901760
        %859 = vmatmul.f32.gmra.mxu0 %v858
        %v860 = vpop.f32.mrf.mxu0
        %v861 = vadd.f32 %v804, %v860
        %v862 = vand.u32 %v411, 4294901760
        %863 = vmatmul.f32.gmra.mxu0 %v862
        %v864 = vpop.f32.mrf.mxu0
        %v865 = vadd.f32 %v808, %v864
        %866 = vdwg.mxu0
        %v867 = vperm.slane %v347, 0
        %v868 = vmul.f32 %v837, %v867
        %v869 = vperm.slane %v347, 1
        %v870 = vmul.f32 %v841, %v869
        %v871 = vadd.f32 %v868, %v870
        %v872 = vperm.slane %v347, 2
        %v873 = vmul.f32 %v845, %v872
        %v874 = vadd.f32 %v871, %v873
        %v875 = vperm.slane %v347, 3
        %v876 = vmul.f32 %v849, %v875
        %v877 = vadd.f32 %v874, %v876
        %v878 = vperm.slane %v347, 4
        %v879 = vmul.f32 %v853, %v878
        %v880 = vadd.f32 %v877, %v879
        %v881 = vperm.slane %v347, 5
        %v882 = vmul.f32 %v857, %v881
        %v883 = vadd.f32 %v880, %v882
        %v884 = vperm.slane %v347, 6
        %v885 = vmul.f32 %v861, %v884
        %v886 = vadd.f32 %v883, %v885
        %v887 = vperm.slane %v347, 7
        %v888 = vmul.f32 %v865, %v887
        %v889 = vadd.f32 %v886, %v888
        %890 = vst [vmem:[%s240] sm:$0xff] %v889
        %s891 = sand.u32 %s117, 1
        %s892 = scalar_lea.sflag [#allocation4], %s891
        %s893 = sand.u32 %s117, 1
        %s894 = smul.addr %s893, 8
        %s895 = scalar_lea.vmem [#allocation9], %s894
        // Predicated region
        $region45: #{tpu_custom_call.1} parent=31 // pred_check
          %p896 = pneg %p127
        $region46: #{tpu_custom_call.1} parent=31 // pred_check_branch
          %898 = sbr.rel (%p896) target = $region48
        $region47: #{tpu_custom_call.1} parent=31 // pred_region
          %900 = vsyncadd %s892, 0
          %s901 = sadd.s32 %s27, %s26
          %s902 = smul.addr %s901, 8
          %s903 = scalar_lea.hbm %s3, %s902
          %s905 = sshll.u32 %s895, 4
          %s906 = int_to_ptr.vmem [resolvable:$true] %s905
          %s907 = sshll.u32 %s903, 4
          %s908 = int_to_ptr.hbm [resolvable:$true] %s907
          %910 = dma.vmem_to_hbm [thread:$0]  %s906, 128, %s908, %s892
        $region48: #{tpu_custom_call.1} parent=31 // pred_fallthru
          _
      $region32: #{tpu_custom_call.1} parent=5 // pred_fallthru
        _
      %p911 = scmp.le.s32.totalorder 2, %s17
      // Predicated region
      $region49: #{tpu_custom_call.1} parent=5 // pred_check
        %p912 = pneg %p911
      $region50: #{tpu_custom_call.1} parent=5 // pred_check_branch
        %914 = sbr.rel (%p912) target = $region52
      $region51: #{tpu_custom_call.1} parent=5 // pred_region
        %s915 = ssub.s32 %s17, 2
        // Predicated region
        $region53: #{tpu_custom_call.1} parent=51 // pred_check
          %p916 = pneg %p133
        $region54: #{tpu_custom_call.1} parent=51 // pred_check_branch
          %918 = sbr.rel (%p916) target = $region56
        $region55: #{tpu_custom_call.1} parent=51 // pred_region
          %s919 = sand.u32 %s118, 1
          %s920 = scalar_lea.sflag [#allocation4], %s919
          %s921 = sand.u32 %s118, 1
          %s922 = smul.addr %s921, 8
          %s923 = scalar_lea.vmem [#allocation9], %s922
          %925 = dma.done %s920, 128
        $region56: #{tpu_custom_call.1} parent=51 // pred_fallthru
          _
      $region52: #{tpu_custom_call.1} parent=5 // pred_fallthru
        _
    $region6: #{tpu_custom_call.1} parent=1 // loop_footer
      %s21 = sadd.s32 1, %s17
    $region7: #{tpu_custom_call.1} parent=1 // loop_footer_branch
      %16 = sbr.rel target = $region3
    $region8: #{tpu_custom_call.1} parent=1 // loop_exit
      _
    %926 = vsyncpa [#allocation3], 1
    %s927 = scalar_lea.sflag [#allocation3], 1
    %928 = vsyncpa %s927, 1
    %929 = vsyncpa [#allocation8], 1
    %s930 = scalar_lea.sflag [#allocation8], 1
    %931 = vsyncpa %s930, 1
    %932 = vsyncpa [#allocation4], 1
    %s933 = scalar_lea.sflag [#allocation4], 1
    %934 = vsyncpa %s933, 1
    %935 = vsyncpa [#allocation5], 1
    %s936 = scalar_lea.sflag [#allocation5], 1
    %937 = vsyncpa %s936, 1

</llo_original>
